<compile_context>
chip_gen: v7x
topology: tpu7x:2x2x1
jax: 0.10.0
libtpu: 0.0.40
codegen_flags: <defaults>
</compile_context>

<pallas_src>
import math

import jax
import jax.numpy as jnp
import numpy as np
from jax.experimental import pallas as pl
from jax.experimental.pallas import tpu as pltpu

# Interior of the halo scratch starts at row _TOP (a multiple of the f32
# sublane tile of 8) and is followed by an 8-row bottom halo block, so all
# in-kernel scratch stores are tile-aligned and halo zeroing is exactly one
# vreg store per halo block.
_TOP = 8
_BOT = 8


def _down_layer_kernel(x_ref, w1_ref, w2_ref, e1_ref, e2_ref, o_ref,
                       xp_ref, yp_ref):
    # x_ref : (Bn, H, W*Cin)          Bn images, W and Cin merged into lanes
    # w1_ref: (3, W*Cin, W*C1)        banded (block-Toeplitz) weights, per dy
    # w2_ref: (3, W*C1,  W*C2)
    # e1_ref: (3, W*C1)               rows = [conv bias, BN scale, BN shift]
    # e2_ref: (3, W*C2)               (pre-tiled to the merged W*C layout)
    # o_ref : (Bn, H, W*C2)           lane-dense output block
    # xp_ref: (_TOP+H+_BOT, W*Cin)    VMEM halo scratch for conv1 input
    # yp_ref: (_TOP+H+_BOT, W*C1)     VMEM halo scratch for the intermediate
    bn_, h, _ = x_ref.shape
    hp = xp_ref.shape[0]

    def zero_halo(pad_ref):
        # Only the halo rows are ever read as zeros and the interior store
        # never touches them: two aligned 8-row (one-vreg) stores per scratch
        # instead of zeroing the whole buffer every step.
        pad_ref[0:_TOP, :] = jnp.zeros((_TOP, pad_ref.shape[1]), jnp.float32)
        pad_ref[_TOP + h:, :] = jnp.zeros(
            (pad_ref.shape[0] - _TOP - h, pad_ref.shape[1]), jnp.float32)

    def conv_bias_relu_bn(pad_ref, w_ref, e_ref):
        # One aligned full load; the +-1-row taps are produced with sublane
        # rolls (XLU slot) so no unaligned-slice relayout feeds the MXU.
        # Width padding is already folded into the banded weights.  The roll
        # wrap rows never land inside the [_TOP, _TOP+h) window.
        xf = pad_ref[...]
        up = pltpu.roll(xf, shift=1, axis=0)[_TOP:_TOP + h, :]       # row r-1
        mid = xf[_TOP:_TOP + h, :]                                   # row r
        dn = pltpu.roll(xf, shift=hp - 1, axis=0)[_TOP:_TOP + h, :]  # row r+1
        acc = jnp.dot(up, w_ref[0], preferred_element_type=jnp.float32)
        acc = acc + jnp.dot(mid, w_ref[1], preferred_element_type=jnp.float32)
        acc = acc + jnp.dot(dn, w_ref[2], preferred_element_type=jnp.float32)
        acc = jnp.maximum(acc + e_ref[0:1, :], 0.0)        # conv bias + ReLU
        return acc * e_ref[1:2, :] + e_ref[2:3, :]         # folded BatchNorm

    zero_halo(xp_ref)
    zero_halo(yp_ref)

    # Static unroll over the Bn images of this grid step (weights resident).
    for b in range(bn_):
        # ---- conv1 + ReLU + bn1 ----
        xp_ref[_TOP:_TOP + h, :] = x_ref[b].astype(jnp.float32)
        y1 = conv_bias_relu_bn(xp_ref, w1_ref, e1_ref)     # (H, W*C1)
        # ---- conv2 + ReLU + bn2 (intermediate never leaves VMEM) ----
        yp_ref[_TOP:_TOP + h, :] = y1
        y2 = conv_bias_relu_bn(yp_ref, w2_ref, e2_ref)     # (H, W*C2)
        o_ref[b] = y2.astype(o_ref.dtype)


# --------------------------------------------------------------------------
# One-time parameter preprocessing (hoisted out of the per-call path).
# --------------------------------------------------------------------------

def _round_up(x, m):
    return ((x + m - 1) // m) * m


def _lane_pad_channels(c, w):
    """Smallest c' >= c such that w * c' is a multiple of 128 (lane width)."""
    step = 128 // math.gcd(w, 128)
    return _round_up(c, step)


def _pad_axis(a, axis, new_size):
    pad = new_size - a.shape[axis]
    if pad == 0:
        return a
    widths = [(0, 0)] * a.ndim
    widths[axis] = (0, pad)
    return jnp.pad(a, widths)


def _banded_weights(w_hwio, w):
    """(3,3,Cin,Cout) HWIO conv weights -> (3, W*Cin, W*Cout) banded matrices.

    B[dy][u*Cin + ci, wo*Cout + co] = w[dy, u-wo+1, ci, co] if 0 <= u-wo+1 <= 2
    else 0.  Folds the width-direction 'same' padding and the three dx taps
    into a single K = W*Cin contraction.
    """
    _, _, cin, cout = w_hwio.shape
    u = jnp.arange(w)[:, None]          # input column
    wo = jnp.arange(w)[None, :]         # output column
    dx = u - wo + 1                     # (W, W)
    valid = (dx >= 0) & (dx <= 2)
    b = w_hwio[:, jnp.clip(dx, 0, 2)]                     # (3, W, W, Cin, Cout)
    b = jnp.where(valid[None, :, :, None, None], b, 0.0)
    b = jnp.transpose(b, (0, 1, 3, 2, 4))                 # (3, W, Cin, W, Cout)
    return b.reshape(3, w * cin, w * cout)


def _fold_bn(gamma, beta, mean, var, eps=1e-5):
    scale = gamma / jnp.sqrt(var + eps)
    return scale, beta - mean * scale


def prepare_down_layer_params(params, W, eps=1e-5):
    """Build banded weights, fold BN, pad channels for lane-dense layout and
    pack bias/scale/shift — executed ONCE per parameter set, not per call."""
    cin, c1 = params["w1"].shape[2], params["w1"].shape[3]
    c2 = params["w2"].shape[3]
    cin_p = _lane_pad_channels(cin, W)
    c1_p = _lane_pad_channels(c1, W)
    c2_p = _lane_pad_channels(c2, W)

    w1 = _pad_axis(_pad_axis(params["w1"], 2, cin_p), 3, c1_p)
    w2 = _pad_axis(_pad_axis(params["w2"], 2, c1_p), 3, c2_p)
    s1, t1 = _fold_bn(params["bn1_gamma"], params["bn1_beta"],
                      params["bn1_mean"], params["bn1_var"], eps)
    s2, t2 = _fold_bn(params["bn2_gamma"], params["bn2_beta"],
                      params["bn2_mean"], params["bn2_var"], eps)

    def pack(bias, scale, shift, cp):
        # One (3, W*C) array per conv: one DMA instead of three tiny ones,
        # pre-tiled to the merged W*C lane layout.  Padded channels get
        # bias/scale/shift = 0 (their band columns/rows are zero anyway).
        return jnp.stack([jnp.tile(_pad_axis(bias, 0, cp), W),
                          jnp.tile(_pad_axis(scale, 0, cp), W),
                          jnp.tile(_pad_axis(shift, 0, cp), W)])

    return {
        "wb1": _banded_weights(w1, W),          # (3, W*cin_p, W*c1_p)
        "wb2": _banded_weights(w2, W),          # (3, W*c1_p,  W*c2_p)
        "e1": pack(params["b1"], s1, t1, c1_p),
        "e2": pack(params["b2"], s2, t2, c2_p),
        "W": W, "cin": cin, "cin_p": cin_p,
        "c1_p": c1_p, "c2": c2, "c2_p": c2_p,
    }


# --------------------------------------------------------------------------
# Forward wrappers.
# --------------------------------------------------------------------------

def _pick_batch_block(n, max_bn=8):
    """Largest divisor of n (<= max_bn) that still leaves >= 2 grid steps so
    both v7x TensorCores get work; falls back to 1."""
    best = 1
    for bn in range(1, min(n, max_bn) + 1):
        if n % bn == 0 and n // bn >= 2:
            best = bn
    return best


def down_layer_forward_merged(x_merged, prep):
    """Core fused forward on the merged layout.

    x_merged: (N, H, W*cin_p) f32, channel-minor merged lanes
              (lane index = w * cin_p + c), Cin already zero-padded to cin_p.
    Returns  (N, H, W*c2_p) in the same merged layout.
    """
    n, h, kin = x_merged.shape
    wb1, wb2, e1, e2 = prep["wb1"], prep["wb2"], prep["e1"], prep["e2"]
    k1, k2 = wb2.shape[1], wb2.shape[2]
    assert kin == wb1.shape[1]

    bn_ = _pick_batch_block(n)
    hp = _TOP + h + _BOT

    return pl.pallas_call(
        _down_layer_kernel,
        out_shape=jax.ShapeDtypeStruct((n, h, k2), x_merged.dtype),
        grid_spec=pltpu.PrefetchScalarGridSpec(
            num_scalar_prefetch=0,
            grid=(n // bn_,),
            in_specs=[
                pl.BlockSpec((bn_, h, kin), lambda i: (i, 0, 0)),
                # TODO(synk): on v7x add pipeline_mode=pl.Buffered(1) to the
                # loop-invariant weight specs (constant index_map) to halve
                # their VMEM footprint once W*C grows; irrelevant here.
                pl.BlockSpec((3, kin, k1), lambda i: (0, 0, 0)),
                pl.BlockSpec((3, k1, k2), lambda i: (0, 0, 0)),
                pl.BlockSpec((3, k1), lambda i: (0, 0)),
                pl.BlockSpec((3, k2), lambda i: (0, 0)),
            ],
            out_specs=pl.BlockSpec((bn_, h, k2), lambda i: (i, 0, 0)),
            scratch_shapes=[
                pltpu.VMEM((hp, kin), jnp.float32),
                pltpu.VMEM((hp, k1), jnp.float32),
            ],
        ),
        compiler_params=pltpu.CompilerParams(
            dimension_semantics=("parallel",),
            # Tiny working set; 48 MiB is safe on v5e/v6e (128 MiB VMEM) and
            # v7x (64 MiB).  Raise toward ~96-110 MiB on v5e/v6e only when
            # scaling to bigger H strips / batch blocks.
            vmem_limit_bytes=48 * 1024 * 1024,
        ),
    )(x_merged, wb1, wb2, e1, e2)


def down_layer_forward(x_nchw, prep):
    """PyTorch-layout adapter: (N, Cin, H, W) -> (N, C2, H, W).

    Prefer down_layer_forward_merged if the caller can keep the merged
    (N, H, W*C) layout end-to-end; these transposes are extra HBM passes
    (fused by XLA into one relayout each way)."""
    n, cin, h, w = x_nchw.shape
    assert w == prep["W"] and cin == prep["cin"]
    cin_p, c2, c2_p = prep["cin_p"], prep["c2"], prep["c2_p"]

    x = jnp.transpose(x_nchw, (0, 2, 3, 1))            # NCHW -> NHWC
    x = _pad_axis(x, 3, cin_p)                          # lane-dense Cin pad
    x = x.reshape(n, h, w * cin_p)

    out = down_layer_forward_merged(x, prep)            # (N, H, W*c2_p)
    out = out.reshape(n, h, w, c2_p)[..., :c2]
    return jnp.transpose(out, (0, 3, 1, 2))             # NHWC -> NCHW


# --------------------------------------------------------------------------
# Pure-JAX reference + parameter init (for the in-script correctness check).
# --------------------------------------------------------------------------

def _reference_forward(x_nchw, params):
    def conv(x, w_hwio, b):
        w_oihw = jnp.transpose(w_hwio, (3, 2, 0, 1))
        y = jax.lax.conv_general_dilated(
            x, w_oihw, window_strides=(1, 1), padding=((1, 1), (1, 1)),
            dimension_numbers=("NCHW", "OIHW", "NCHW"))
        return y + b.reshape(1, -1, 1, 1)

    def bn(x, gamma, beta, mean, var, eps=1e-5):
        sc = (gamma / jnp.sqrt(var + eps)).reshape(1, -1, 1, 1)
        sh = (beta - mean * gamma / jnp.sqrt(var + eps)).reshape(1, -1, 1, 1)
        return x * sc + sh

    y = jnp.maximum(conv(x_nchw, params["w1"], params["b1"]), 0.0)
    y = bn(y, params["bn1_gamma"], params["bn1_beta"],
           params["bn1_mean"], params["bn1_var"])
    y = jnp.maximum(conv(y, params["w2"], params["b2"]), 0.0)
    y = bn(y, params["bn2_gamma"], params["bn2_beta"],
           params["bn2_mean"], params["bn2_var"])
    return y


def init_params(key, in_units, out_units):
    ks = jax.random.split(key, 10)
    p = {}
    # Conv weights in HWIO layout (kh, kw, Cin, Cout).
    p["w1"] = 0.1 * jax.random.normal(ks[0], (3, 3, in_units, out_units), jnp.float32)
    p["b1"] = 0.1 * jax.random.normal(ks[1], (out_units,), jnp.float32)
    p["w2"] = 0.1 * jax.random.normal(ks[2], (3, 3, out_units, out_units), jnp.float32)
    p["b2"] = 0.1 * jax.random.normal(ks[3], (out_units,), jnp.float32)
    # BatchNorm parameters / running stats (inference mode).
    p["bn1_gamma"] = 1.0 + 0.1 * jax.random.normal(ks[4], (out_units,), jnp.float32)
    p["bn1_beta"] = 0.1 * jax.random.normal(ks[5], (out_units,), jnp.float32)
    p["bn1_mean"] = 0.1 * jax.random.normal(ks[6], (out_units,), jnp.float32)
    p["bn1_var"] = 0.5 + jnp.abs(0.5 * jax.random.normal(ks[7], (out_units,), jnp.float32))
    p["bn2_gamma"] = 1.0 + 0.1 * jax.random.normal(ks[8], (out_units,), jnp.float32)
    p["bn2_beta"] = 0.1 * jax.random.normal(ks[9], (out_units,), jnp.float32)
    p["bn2_mean"] = jnp.zeros((out_units,), jnp.float32)
    p["bn2_var"] = jnp.ones((out_units,), jnp.float32)
    return p


if __name__ == "__main__":
    key = jax.random.PRNGKey(0)
    kx, kp = jax.random.split(key)

    N, Cin, H, W = 2, 4, 16, 16
    Cout = 8
    x = jax.random.normal(kx, (N, Cin, H, W), jnp.float32)
    params = init_params(kp, Cin, Cout)

    # Hoisted preprocessing: band construction / BN folding run once here,
    # never inside the per-call forward path.
    prep = prepare_down_layer_params(params, W)
    fwd = jax.jit(lambda xx: down_layer_forward(xx, prep))

    out = jax.block_until_ready(fwd(x))
    ref = jax.block_until_ready(_reference_forward(x, params))

    assert out.shape == (N, Cout, H, W)
    np.testing.assert_allclose(np.asarray(out), np.asarray(ref),
                               rtol=1e-4, atol=1e-4)
    print("KERNEL_OK")
</pallas_src>

<mosaic_0001>
module attributes {stable_mosaic.version = 11 : i64} {
  func.func @_down_layer_kernel(%arg0: i32, %arg1: memref<1x16x128xf32, #tpu.memory_space<vmem>>, %arg2: memref<3x128x128xf32, #tpu.memory_space<vmem>>, %arg3: memref<3x128x128xf32, #tpu.memory_space<vmem>>, %arg4: memref<3x128xf32, #tpu.memory_space<vmem>>, %arg5: memref<3x128xf32, #tpu.memory_space<vmem>>, %arg6: memref<1x16x128xf32, #tpu.memory_space<vmem>>, %arg7: memref<32x128xf32, #tpu.memory_space<vmem>>, %arg8: memref<32x128xf32, #tpu.memory_space<vmem>>) attributes {dimension_semantics = [#tpu.dimension_semantics<parallel>], iteration_bounds = array<i64: 2>, scalar_prefetch = 0 : i64, scratch_operands = 2 : i64, tpu.core_type = #tpu.core_type<tc>, window_params = [{transform_indices = @transform_0, window_bounds = array<i64: 1, 16, 128>}, {pipeline_mode = #tpu.pipeline_mode<synchronous>, transform_indices = @transform_1, window_bounds = array<i64: 3, 128, 128>}, {pipeline_mode = #tpu.pipeline_mode<synchronous>, transform_indices = @transform_2, window_bounds = array<i64: 3, 128, 128>}, {pipeline_mode = #tpu.pipeline_mode<synchronous>, transform_indices = @transform_3, window_bounds = array<i64: 3, 128>}, {pipeline_mode = #tpu.pipeline_mode<synchronous>, transform_indices = @transform_4, window_bounds = array<i64: 3, 128>}, {transform_indices = @transform_5, window_bounds = array<i64: 1, 16, 128>}]} {
    %cst = arith.constant 0.000000e+00 : f32
    %0 = vector.broadcast %cst : f32 to vector<8x128xf32>
    %c0 = arith.constant 0 : index
    %c0_0 = arith.constant 0 : index
    %1 = vector.load %arg7[%c0, %c0_0] : memref<32x128xf32, #tpu.memory_space<vmem>>, vector<8x128xf32>
    tpu.vector_store %arg7[%c0, %c0_0], %0 {strides = array<i32>} : memref<32x128xf32, #tpu.memory_space<vmem>>, vector<8x128xf32>,
    %cst_1 = arith.constant 0.000000e+00 : f32
    %2 = vector.broadcast %cst_1 : f32 to vector<8x128xf32>
    %c24 = arith.constant 24 : index
    %c0_2 = arith.constant 0 : index
    %3 = vector.load %arg7[%c24, %c0_2] : memref<32x128xf32, #tpu.memory_space<vmem>>, vector<8x128xf32>
    tpu.vector_store %arg7[%c24, %c0_2], %2 {strides = array<i32>} : memref<32x128xf32, #tpu.memory_space<vmem>>, vector<8x128xf32>,
    %cst_3 = arith.constant 0.000000e+00 : f32
    %4 = vector.broadcast %cst_3 : f32 to vector<8x128xf32>
    %c0_4 = arith.constant 0 : index
    %c0_5 = arith.constant 0 : index
    %5 = vector.load %arg8[%c0_4, %c0_5] : memref<32x128xf32, #tpu.memory_space<vmem>>, vector<8x128xf32>
    tpu.vector_store %arg8[%c0_4, %c0_5], %4 {strides = array<i32>} : memref<32x128xf32, #tpu.memory_space<vmem>>, vector<8x128xf32>,
    %cst_6 = arith.constant 0.000000e+00 : f32
    %6 = vector.broadcast %cst_6 : f32 to vector<8x128xf32>
    %c24_7 = arith.constant 24 : index
    %c0_8 = arith.constant 0 : index
    %7 = vector.load %arg8[%c24_7, %c0_8] : memref<32x128xf32, #tpu.memory_space<vmem>>, vector<8x128xf32>
    tpu.vector_store %arg8[%c24_7, %c0_8], %6 {strides = array<i32>} : memref<32x128xf32, #tpu.memory_space<vmem>>, vector<8x128xf32>,
    %c0_9 = arith.constant 0 : index
    %c0_10 = arith.constant 0 : index
    %c0_11 = arith.constant 0 : index
    %8 = vector.load %arg1[%c0_9, %c0_10, %c0_11] : memref<1x16x128xf32, #tpu.memory_space<vmem>>, vector<1x16x128xf32>
    %9 = vector.shape_cast %8 : vector<1x16x128xf32> to vector<16x128xf32>
    %c8 = arith.constant 8 : index
    %c0_12 = arith.constant 0 : index
    %10 = vector.load %arg7[%c8, %c0_12] : memref<32x128xf32, #tpu.memory_space<vmem>>, vector<16x128xf32>
    tpu.vector_store %arg7[%c8, %c0_12], %9 {strides = array<i32>} : memref<32x128xf32, #tpu.memory_space<vmem>>, vector<16x128xf32>,
    %c0_13 = arith.constant 0 : index
    %c0_14 = arith.constant 0 : index
    %11 = vector.load %arg7[%c0_13, %c0_14] : memref<32x128xf32, #tpu.memory_space<vmem>>, vector<32x128xf32>
    %c1_i32 = arith.constant 1 : i32
    %12 = tpu.dynamic_rotate %11 by %c1_i32 dim 0 : vector<32x128xf32>, i32 -> vector<32x128xf32>
    %13 = vector.extract_strided_slice %12 {offsets = [8, 0], sizes = [16, 128], strides = [1, 1]} : vector<32x128xf32> to vector<16x128xf32>
    %14 = vector.extract_strided_slice %11 {offsets = [8, 0], sizes = [16, 128], strides = [1, 1]} : vector<32x128xf32> to vector<16x128xf32>
    %c31_i32 = arith.constant 31 : i32
    %15 = tpu.dynamic_rotate %11 by %c31_i32 dim 0 : vector<32x128xf32>, i32 -> vector<32x128xf32>
    %16 = vector.extract_strided_slice %15 {offsets = [8, 0], sizes = [16, 128], strides = [1, 1]} : vector<32x128xf32> to vector<16x128xf32>
    %c0_15 = arith.constant 0 : index
    %c0_16 = arith.constant 0 : index
    %c0_17 = arith.constant 0 : index
    %17 = vector.load %arg2[%c0_15, %c0_16, %c0_17] : memref<3x128x128xf32, #tpu.memory_space<vmem>>, vector<1x128x128xf32>
    %18 = vector.shape_cast %17 : vector<1x128x128xf32> to vector<128x128xf32>
    %cst_18 = arith.constant dense<0.000000e+00> : vector<16x128xf32>
    %19 = tpu.matmul %13, %18, %cst_18 {dimension_numbers = #tpu.dot_dimension_numbers<[1], [0], [0], [1], [0, 0, 1, 1], [], []>} : vector<16x128xf32>, vector<128x128xf32>, vector<16x128xf32> -> vector<16x128xf32>
    %c1 = arith.constant 1 : index
    %c0_19 = arith.constant 0 : index
    %c0_20 = arith.constant 0 : index
    %20 = vector.load %arg2[%c1, %c0_19, %c0_20] : memref<3x128x128xf32, #tpu.memory_space<vmem>>, vector<1x128x128xf32>
    %21 = vector.shape_cast %20 : vector<1x128x128xf32> to vector<128x128xf32>
    %cst_21 = arith.constant dense<0.000000e+00> : vector<16x128xf32>
    %22 = tpu.matmul %14, %21, %cst_21 {dimension_numbers = #tpu.dot_dimension_numbers<[1], [0], [0], [1], [0, 0, 1, 1], [], []>} : vector<16x128xf32>, vector<128x128xf32>, vector<16x128xf32> -> vector<16x128xf32>
    %23 = arith.addf %19, %22 : vector<16x128xf32>
    %c2 = arith.constant 2 : index
    %c0_22 = arith.constant 0 : index
    %c0_23 = arith.constant 0 : index
    %24 = vector.load %arg2[%c2, %c0_22, %c0_23] : memref<3x128x128xf32, #tpu.memory_space<vmem>>, vector<1x128x128xf32>
    %25 = vector.shape_cast %24 : vector<1x128x128xf32> to vector<128x128xf32>
    %cst_24 = arith.constant dense<0.000000e+00> : vector<16x128xf32>
    %26 = tpu.matmul %16, %25, %cst_24 {dimension_numbers = #tpu.dot_dimension_numbers<[1], [0], [0], [1], [0, 0, 1, 1], [], []>} : vector<16x128xf32>, vector<128x128xf32>, vector<16x128xf32> -> vector<16x128xf32>
    %27 = arith.addf %23, %26 : vector<16x128xf32>
    %c0_25 = arith.constant 0 : index
    %c0_26 = arith.constant 0 : index
    %28 = vector.load %arg4[%c0_25, %c0_26] : memref<3x128xf32, #tpu.memory_space<vmem>>, vector<1x128xf32>
    %29 = vector.broadcast %28 : vector<1x128xf32> to vector<16x128xf32>
    %30 = arith.addf %27, %29 : vector<16x128xf32>
    %cst_27 = arith.constant 0.000000e+00 : f32
    %31 = vector.broadcast %cst_27 : f32 to vector<16x128xf32>
    %32 = arith.maximumf %30, %31 : vector<16x128xf32>
    %c1_28 = arith.constant 1 : index
    %c0_29 = arith.constant 0 : index
    %33 = vector.load %arg4[%c1_28, %c0_29] : memref<3x128xf32, #tpu.memory_space<vmem>>, vector<1x128xf32>
    %34 = vector.broadcast %33 : vector<1x128xf32> to vector<16x128xf32>
    %35 = arith.mulf %32, %34 : vector<16x128xf32>
    %c2_30 = arith.constant 2 : index
    %c0_31 = arith.constant 0 : index
    %36 = vector.load %arg4[%c2_30, %c0_31] : memref<3x128xf32, #tpu.memory_space<vmem>>, vector<1x128xf32>
    %37 = vector.broadcast %36 : vector<1x128xf32> to vector<16x128xf32>
    %38 = arith.addf %35, %37 : vector<16x128xf32>
    %c8_32 = arith.constant 8 : index
    %c0_33 = arith.constant 0 : index
    %39 = vector.load %arg8[%c8_32, %c0_33] : memref<32x128xf32, #tpu.memory_space<vmem>>, vector<16x128xf32>
    tpu.vector_store %arg8[%c8_32, %c0_33], %38 {strides = array<i32>} : memref<32x128xf32, #tpu.memory_space<vmem>>, vector<16x128xf32>,
    %c0_34 = arith.constant 0 : index
    %c0_35 = arith.constant 0 : index
    %40 = vector.load %arg8[%c0_34, %c0_35] : memref<32x128xf32, #tpu.memory_space<vmem>>, vector<32x128xf32>
    %c1_i32_36 = arith.constant 1 : i32
    %41 = tpu.dynamic_rotate %40 by %c1_i32_36 dim 0 : vector<32x128xf32>, i32 -> vector<32x128xf32>
    %42 = vector.extract_strided_slice %41 {offsets = [8, 0], sizes = [16, 128], strides = [1, 1]} : vector<32x128xf32> to vector<16x128xf32>
    %43 = vector.extract_strided_slice %40 {offsets = [8, 0], sizes = [16, 128], strides = [1, 1]} : vector<32x128xf32> to vector<16x128xf32>
    %c31_i32_37 = arith.constant 31 : i32
    %44 = tpu.dynamic_rotate %40 by %c31_i32_37 dim 0 : vector<32x128xf32>, i32 -> vector<32x128xf32>
    %45 = vector.extract_strided_slice %44 {offsets = [8, 0], sizes = [16, 128], strides = [1, 1]} : vector<32x128xf32> to vector<16x128xf32>
    %c0_38 = arith.constant 0 : index
    %c0_39 = arith.constant 0 : index
    %c0_40 = arith.constant 0 : index
    %46 = vector.load %arg3[%c0_38, %c0_39, %c0_40] : memref<3x128x128xf32, #tpu.memory_space<vmem>>, vector<1x128x128xf32>
    %47 = vector.shape_cast %46 : vector<1x128x128xf32> to vector<128x128xf32>
    %cst_41 = arith.constant dense<0.000000e+00> : vector<16x128xf32>
    %48 = tpu.matmul %42, %47, %cst_41 {dimension_numbers = #tpu.dot_dimension_numbers<[1], [0], [0], [1], [0, 0, 1, 1], [], []>} : vector<16x128xf32>, vector<128x128xf32>, vector<16x128xf32> -> vector<16x128xf32>
    %c1_42 = arith.constant 1 : index
    %c0_43 = arith.constant 0 : index
    %c0_44 = arith.constant 0 : index
    %49 = vector.load %arg3[%c1_42, %c0_43, %c0_44] : memref<3x128x128xf32, #tpu.memory_space<vmem>>, vector<1x128x128xf32>
    %50 = vector.shape_cast %49 : vector<1x128x128xf32> to vector<128x128xf32>
    %cst_45 = arith.constant dense<0.000000e+00> : vector<16x128xf32>
    %51 = tpu.matmul %43, %50, %cst_45 {dimension_numbers = #tpu.dot_dimension_numbers<[1], [0], [0], [1], [0, 0, 1, 1], [], []>} : vector<16x128xf32>, vector<128x128xf32>, vector<16x128xf32> -> vector<16x128xf32>
    %52 = arith.addf %48, %51 : vector<16x128xf32>
    %c2_46 = arith.constant 2 : index
    %c0_47 = arith.constant 0 : index
    %c0_48 = arith.constant 0 : index
    %53 = vector.load %arg3[%c2_46, %c0_47, %c0_48] : memref<3x128x128xf32, #tpu.memory_space<vmem>>, vector<1x128x128xf32>
    %54 = vector.shape_cast %53 : vector<1x128x128xf32> to vector<128x128xf32>
    %cst_49 = arith.constant dense<0.000000e+00> : vector<16x128xf32>
    %55 = tpu.matmul %45, %54, %cst_49 {dimension_numbers = #tpu.dot_dimension_numbers<[1], [0], [0], [1], [0, 0, 1, 1], [], []>} : vector<16x128xf32>, vector<128x128xf32>, vector<16x128xf32> -> vector<16x128xf32>
    %56 = arith.addf %52, %55 : vector<16x128xf32>
    %c0_50 = arith.constant 0 : index
    %c0_51 = arith.constant 0 : index
    %57 = vector.load %arg5[%c0_50, %c0_51] : memref<3x128xf32, #tpu.memory_space<vmem>>, vector<1x128xf32>
    %58 = vector.broadcast %57 : vector<1x128xf32> to vector<16x128xf32>
    %59 = arith.addf %56, %58 : vector<16x128xf32>
    %cst_52 = arith.constant 0.000000e+00 : f32
    %60 = vector.broadcast %cst_52 : f32 to vector<16x128xf32>
    %61 = arith.maximumf %59, %60 : vector<16x128xf32>
    %c1_53 = arith.constant 1 : index
    %c0_54 = arith.constant 0 : index
    %62 = vector.load %arg5[%c1_53, %c0_54] : memref<3x128xf32, #tpu.memory_space<vmem>>, vector<1x128xf32>
    %63 = vector.broadcast %62 : vector<1x128xf32> to vector<16x128xf32>
    %64 = arith.mulf %61, %63 : vector<16x128xf32>
    %c2_55 = arith.constant 2 : index
    %c0_56 = arith.constant 0 : index
    %65 = vector.load %arg5[%c2_55, %c0_56] : memref<3x128xf32, #tpu.memory_space<vmem>>, vector<1x128xf32>
    %66 = vector.broadcast %65 : vector<1x128xf32> to vector<16x128xf32>
    %67 = arith.addf %64, %66 : vector<16x128xf32>
    %c0_57 = arith.constant 0 : index
    %c0_58 = arith.constant 0 : index
    %c0_59 = arith.constant 0 : index
    %68 = vector.load %arg6[%c0_57, %c0_58, %c0_59] : memref<1x16x128xf32, #tpu.memory_space<vmem>>, vector<1x16x128xf32>
    %69 = vector.shape_cast %68 : vector<1x16x128xf32> to vector<16x128xf32>
    %70 = vector.shape_cast %67 : vector<16x128xf32> to vector<1x16x128xf32>
    tpu.vector_store %arg6[%c0_57, %c0_58, %c0_59], %70 {strides = array<i32>} : memref<1x16x128xf32, #tpu.memory_space<vmem>>, vector<1x16x128xf32>,
    return
  }
  func.func @transform_0(%arg0: i32) -> (i32, i32, i32) {
    %c0_i32 = arith.constant 0 : i32
    %c0_i32_0 = arith.constant 0 : i32
    %c0_i32_1 = arith.constant 0 : i32
    return %arg0, %c0_i32, %c0_i32_0 : i32, i32, i32
  }
  func.func @transform_1(%arg0: i32) -> (i32, i32, i32) {
    %c0_i32 = arith.constant 0 : i32
    %c0_i32_0 = arith.constant 0 : i32
    %c0_i32_1 = arith.constant 0 : i32
    %c0_i32_2 = arith.constant 0 : i32
    return %c0_i32, %c0_i32_0, %c0_i32_1 : i32, i32, i32
  }
  func.func @transform_2(%arg0: i32) -> (i32, i32, i32) {
    %c0_i32 = arith.constant 0 : i32
    %c0_i32_0 = arith.constant 0 : i32
    %c0_i32_1 = arith.constant 0 : i32
    %c0_i32_2 = arith.constant 0 : i32
    return %c0_i32, %c0_i32_0, %c0_i32_1 : i32, i32, i32
  }
  func.func @transform_3(%arg0: i32) -> (i32, i32) {
    %c0_i32 = arith.constant 0 : i32
    %c0_i32_0 = arith.constant 0 : i32
    %c0_i32_1 = arith.constant 0 : i32
    return %c0_i32, %c0_i32_0 : i32, i32
  }
  func.func @transform_4(%arg0: i32) -> (i32, i32) {
    %c0_i32 = arith.constant 0 : i32
    %c0_i32_0 = arith.constant 0 : i32
    %c0_i32_1 = arith.constant 0 : i32
    return %c0_i32, %c0_i32_0 : i32, i32
  }
  func.func @transform_5(%arg0: i32) -> (i32, i32, i32) {
    %c0_i32 = arith.constant 0 : i32
    %c0_i32_0 = arith.constant 0 : i32
    %c0_i32_1 = arith.constant 0 : i32
    return %arg0, %c0_i32, %c0_i32_0 : i32, i32, i32
  }
}

</mosaic_0001>

<llo_original>
// kernel: _lambda_.1
$region0: #{_lambda_.1}
  #allocation0 [shape = 'u32[]', space=smem, size = 0x4, offset = 0x4, fixed_abs, tag = 'smem constant byte address 0x4 - core index']
  #allocation1 [shape = 'u32[144,128]{1,0:T(1,128)}', space=vmem, size = 0x12000, scoped, tag = 'internal scratch']
  #allocation2 [shape = 'f32[32,128]{1,0:T(8,128)}', space=vmem, size = 0x4000, scoped, tag = 'scratch operand']
  #allocation3 [shape = 'f32[32,128]{1,0:T(8,128)}', space=vmem, size = 0x4000, scoped, tag = 'scratch operand']
  %s0 = inlined_call_operand.vmem [shape: f32[2,16,128], index: 0, kind: input, shape index: {}]
  %s1 = inlined_call_operand.vmem [shape: f32[3,128,128], index: 1, kind: input, shape index: {}]
  %s2 = inlined_call_operand.vmem [shape: f32[3,128,128], index: 2, kind: input, shape index: {}]
  %s3 = inlined_call_operand.vmem [shape: f32[3,128], index: 3, kind: input, shape index: {}]
  %s4 = inlined_call_operand.vmem [shape: f32[3,128], index: 4, kind: input, shape index: {}]
  %s5 = inlined_call_operand.vmem [shape: f32[2,16,128], index: 5, kind: output, shape index: {}]
  %s6 = sld [smem:[#allocation0]]
  $region53: #{_lambda_.1} parent=0
    _
  %s8 = ssub.s32 1, %s6
  %s9 = scalar_select 0, %s8, %s6
  loop: start=0, step=1, limit=4
  $region2: #{_lambda_.1} parent=0 // loop_pre_header
    _
  $region3: #{_lambda_.1} parent=0 // loop_header
    %s11 = sphi 0, %s15
    %p12 = scmp.ge.s32.totalorder %s11, 4
    %s21 = sphi 0, %s23
    %s24 = sphi 0, %s21
    %s25 = sphi 0, %s24
    %s41 = sphi 0, %s25
    %s45 = sphi 0, %s45
    %s47 = sphi 0, %s45
    %s48 = sphi 0, %s47
    %s62 = sphi 0, %s48
    %s66 = sphi 0, %s66
    %s68 = sphi 0, %s66
    %s69 = sphi 0, %s68
    %s83 = sphi 0, %s69
    %s87 = sphi 0, %s87
    %s89 = sphi 0, %s87
    %s90 = sphi 0, %s89
    %s104 = sphi 0, %s90
    %s108 = sphi 0, %s108
    %s110 = sphi 0, %s108
    %s111 = sphi 0, %s110
    %s125 = sphi 0, %s111
    %s131 = sphi 0, %s133
    %s134 = sphi 0, %s131
    %s135 = sphi 0, %s134
    %s151 = sphi 0, %s135
  $region4: #{_lambda_.1} parent=0 // loop_header_branch
    %14 = sbr.rel (%p12) target = $region8
  $region5: #{_lambda_.1} parent=0 // loop_body
    %s16 = ssub.s32 %s11, 1
    %s17 = ssub.s32 %s11, 2
    %s18 = sadd.s32 %s11, 1
    %s19 = ssub.s32 %s11, %s18
    %p20 = scmp.eq.s32.totalorder %s19, 0
    %s22 = sadd.s32 %s21, 1
    %s23 = scalar_select %p20, %s21, %s22
    %p26 = pneg %p20
    %p27 = scmp.eq.s32.totalorder %s11, 1
    %p28 = por %p26, %p27
    %p29 = scmp.ne.s32.totalorder %s21, %s24
    %p30 = scmp.eq.s32.totalorder %s11, 0
    %p31 = por %p29, %p30
    %p32 = scmp.ne.s32.totalorder %s21, %s24
    %p33 = scmp.eq.s32.totalorder %s16, 1
    %p34 = por %p32, %p33
    %p35 = scmp.ne.s32.totalorder %s24, %s25
    %p36 = scmp.eq.s32.totalorder %s16, 0
    %p37 = por %p35, %p36
    %p38 = scmp.ne.s32.totalorder %s24, %s25
    %p39 = scmp.eq.s32.totalorder %s17, 1
    %p40 = por %p38, %p39
    %p42 = scmp.ne.s32.totalorder %s25, %s41
    %p43 = scmp.eq.s32.totalorder %s17, 0
    %p44 = por %p42, %p43
    %s46 = sadd.s32 %s45, 1
    %p49 = scmp.eq.s32.totalorder %s11, 1
    %p50 = scmp.ne.s32.totalorder %s45, %s47
    %p51 = scmp.eq.s32.totalorder %s11, 0
    %p52 = por %p50, %p51
    %p53 = scmp.ne.s32.totalorder %s45, %s47
    %p54 = scmp.eq.s32.totalorder %s16, 1
    %p55 = por %p53, %p54
    %p56 = scmp.ne.s32.totalorder %s47, %s48
    %p57 = scmp.eq.s32.totalorder %s16, 0
    %p58 = por %p56, %p57
    %p59 = scmp.ne.s32.totalorder %s47, %s48
    %p60 = scmp.eq.s32.totalorder %s17, 1
    %p61 = por %p59, %p60
    %p63 = scmp.ne.s32.totalorder %s48, %s62
    %p64 = scmp.eq.s32.totalorder %s17, 0
    %p65 = por %p63, %p64
    %s67 = sadd.s32 %s66, 1
    %p70 = scmp.eq.s32.totalorder %s11, 1
    %p71 = scmp.ne.s32.totalorder %s66, %s68
    %p72 = scmp.eq.s32.totalorder %s11, 0
    %p73 = por %p71, %p72
    %p74 = scmp.ne.s32.totalorder %s66, %s68
    %p75 = scmp.eq.s32.totalorder %s16, 1
    %p76 = por %p74, %p75
    %p77 = scmp.ne.s32.totalorder %s68, %s69
    %p78 = scmp.eq.s32.totalorder %s16, 0
    %p79 = por %p77, %p78
    %p80 = scmp.ne.s32.totalorder %s68, %s69
    %p81 = scmp.eq.s32.totalorder %s17, 1
    %p82 = por %p80, %p81
    %p84 = scmp.ne.s32.totalorder %s69, %s83
    %p85 = scmp.eq.s32.totalorder %s17, 0
    %p86 = por %p84, %p85
    %s88 = sadd.s32 %s87, 1
    %p91 = scmp.eq.s32.totalorder %s11, 1
    %p92 = scmp.ne.s32.totalorder %s87, %s89
    %p93 = scmp.eq.s32.totalorder %s11, 0
    %p94 = por %p92, %p93
    %p95 = scmp.ne.s32.totalorder %s87, %s89
    %p96 = scmp.eq.s32.totalorder %s16, 1
    %p97 = por %p95, %p96
    %p98 = scmp.ne.s32.totalorder %s89, %s90
    %p99 = scmp.eq.s32.totalorder %s16, 0
    %p100 = por %p98, %p99
    %p101 = scmp.ne.s32.totalorder %s89, %s90
    %p102 = scmp.eq.s32.totalorder %s17, 1
    %p103 = por %p101, %p102
    %p105 = scmp.ne.s32.totalorder %s90, %s104
    %p106 = scmp.eq.s32.totalorder %s17, 0
    %p107 = por %p105, %p106
    %s109 = sadd.s32 %s108, 1
    %p112 = scmp.eq.s32.totalorder %s11, 1
    %p113 = scmp.ne.s32.totalorder %s108, %s110
    %p114 = scmp.eq.s32.totalorder %s11, 0
    %p115 = por %p113, %p114
    %p116 = scmp.ne.s32.totalorder %s108, %s110
    %p117 = scmp.eq.s32.totalorder %s16, 1
    %p118 = por %p116, %p117
    %p119 = scmp.ne.s32.totalorder %s110, %s111
    %p120 = scmp.eq.s32.totalorder %s16, 0
    %p121 = por %p119, %p120
    %p122 = scmp.ne.s32.totalorder %s110, %s111
    %p123 = scmp.eq.s32.totalorder %s17, 1
    %p124 = por %p122, %p123
    %p126 = scmp.ne.s32.totalorder %s111, %s125
    %p127 = scmp.eq.s32.totalorder %s17, 0
    %p128 = por %p126, %p127
    %s129 = ssub.s32 %s11, %s18
    %p130 = scmp.eq.s32.totalorder %s129, 0
    %s132 = sadd.s32 %s131, 1
    %s133 = scalar_select %p130, %s131, %s132
    %p136 = pneg %p130
    %p137 = scmp.eq.s32.totalorder %s11, 1
    %p138 = por %p136, %p137
    %p139 = scmp.ne.s32.totalorder %s131, %s134
    %p140 = scmp.eq.s32.totalorder %s11, 0
    %p141 = por %p139, %p140
    %p142 = scmp.ne.s32.totalorder %s131, %s134
    %p143 = scmp.eq.s32.totalorder %s16, 1
    %p144 = por %p142, %p143
    %p145 = scmp.ne.s32.totalorder %s134, %s135
    %p146 = scmp.eq.s32.totalorder %s16, 0
    %p147 = por %p145, %p146
    %p148 = scmp.ne.s32.totalorder %s134, %s135
    %p149 = scmp.eq.s32.totalorder %s17, 1
    %p150 = por %p148, %p149
    %p152 = scmp.ne.s32.totalorder %s135, %s151
    %p153 = scmp.eq.s32.totalorder %s17, 0
    %p154 = por %p152, %p153
    %p155 = scmp.le.s32.totalorder 1, %s11
    %p156 = scmp.lt.s32.totalorder %s11, 3
    %p157 = pnand %p155, %p156
    %p158 = pneg %p157
    // Predicated region
    $region9: #{_lambda_.1} parent=5 // pred_check
      _
    $region10: #{_lambda_.1} parent=5 // pred_check_branch
      %160 = sbr.rel (%p157) target = $region12
    $region11: #{_lambda_.1} parent=5 // pred_region
      %s161 = ssub.s32 %s11, 1
      // Predicated region
      $region13: #{_lambda_.1} parent=11 // pred_check
        %p162 = pneg %p58
      $region14: #{_lambda_.1} parent=11 // pred_check_branch
        %164 = sbr.rel (%p162) target = $region16
      $region15: #{_lambda_.1} parent=11 // pred_region
        _
      $region16: #{_lambda_.1} parent=11 // pred_fallthru
        _
      // Predicated region
      $region17: #{_lambda_.1} parent=11 // pred_check
        %p165 = pneg %p79
      $region18: #{_lambda_.1} parent=11 // pred_check_branch
        %167 = sbr.rel (%p165) target = $region20
      $region19: #{_lambda_.1} parent=11 // pred_region
        _
      $region20: #{_lambda_.1} parent=11 // pred_fallthru
        _
      // Predicated region
      $region21: #{_lambda_.1} parent=11 // pred_check
        %p168 = pneg %p100
      $region22: #{_lambda_.1} parent=11 // pred_check_branch
        %170 = sbr.rel (%p168) target = $region24
      $region23: #{_lambda_.1} parent=11 // pred_region
        _
      $region24: #{_lambda_.1} parent=11 // pred_fallthru
        _
      // Predicated region
      $region25: #{_lambda_.1} parent=11 // pred_check
        %p171 = pneg %p121
      $region26: #{_lambda_.1} parent=11 // pred_check_branch
        %173 = sbr.rel (%p171) target = $region28
      $region27: #{_lambda_.1} parent=11 // pred_region
        _
      $region28: #{_lambda_.1} parent=11 // pred_fallthru
        _
    $region12: #{_lambda_.1} parent=5 // pred_fallthru
      _
    %p174 = scmp.lt.s32.totalorder %s11, 2
    // Predicated region
    $region29: #{_lambda_.1} parent=5 // pred_check
      %p175 = pneg %p174
    $region30: #{_lambda_.1} parent=5 // pred_check_branch
      %177 = sbr.rel (%p175) target = $region32
    $region31: #{_lambda_.1} parent=5 // pred_region
      // Predicated region
      $region33: #{_lambda_.1} parent=31 // pred_check
        %p178 = pneg %p31
      $region34: #{_lambda_.1} parent=31 // pred_check_branch
        %180 = sbr.rel (%p178) target = $region36
      $region35: #{_lambda_.1} parent=31 // pred_region
        %p181 = scmp.lt.s32.totalorder %s11, 1
        %s182 = scalar_select %p181, %s11, 1
        %s183 = smul.addr %s182, 2
        %s184 = smul.addr %s183, 8
        %s185 = scalar_lea.vmem %s0, %s184
      $region36: #{_lambda_.1} parent=31 // pred_fallthru
        _
    $region32: #{_lambda_.1} parent=5 // pred_fallthru
      _
    %p186 = scmp.le.s32.totalorder 1, %s11
    %p187 = scmp.lt.s32.totalorder %s11, 3
    %p188 = pnand %p186, %p187
    %p189 = pneg %p188
    // Predicated region
    $region37: #{_lambda_.1} parent=5 // pred_check
      _
    $region38: #{_lambda_.1} parent=5 // pred_check_branch
      %191 = sbr.rel (%p188) target = $region40
    $region39: #{_lambda_.1} parent=5 // pred_region
      %s192 = ssub.s32 %s11, 1
      %p193 = scmp.lt.s32.totalorder %s16, 1
      %s194 = scalar_select %p193, %s16, 1
      %s195 = smul.addr %s194, 2
      %s196 = smul.addr %s195, 8
      %s197 = scalar_lea.vmem %s0, %s196
      %p198 = pneg %p37
      %p199 = pneg %p34
      %p200 = pneg %p58
      %p201 = pneg %p55
      %p202 = pneg %p79
      %p203 = pneg %p76
      %p204 = pneg %p100
      %p205 = pneg %p97
      %p206 = pneg %p121
      %p207 = pneg %p118
      %p208 = pneg %p147
      %p209 = pneg %p144
      %p210 = scmp.lt.s32.totalorder %s16, 1
      %s211 = scalar_select %p210, %s16, 1
      %s212 = smul.addr %s211, 2
      %s213 = smul.addr %s212, 8
      %s214 = scalar_lea.vmem %s5, %s213
      %p215 = scmp.lt.s32.totalorder %s16, 1
      %s216 = scalar_select %p215, %s16, 1
      %s217 = smul.addr %s216, 2
      %s218 = smul.addr %s217, 8
      %s219 = scalar_lea.vmem %s0, %s218
      %p220 = scmp.lt.s32.totalorder %s16, 1
      %s221 = scalar_select %p220, %s16, 1
      %s222 = smul.addr %s221, 2
      %s223 = smul.addr %s222, 8
      %s224 = scalar_lea.vmem %s5, %s223
      %225 = vst [vmem:[#allocation2] sm:$0xff] 0.0
      %226 = vst [vmem:[#allocation2 + $0x18] sm:$0xff] 0.0
      %227 = vst [vmem:[#allocation3] sm:$0xff] 0.0
      %228 = vst [vmem:[#allocation3 + $0x18] sm:$0xff] 0.0
      %v229 = vld [vmem:[%s219] sm:$0xff]
      %v230 = vld [vmem:[%s219 + $0x8] sm:$0xff]
      %231 = vst [vmem:[#allocation2 + $0x8] sm:$0xff] %v229
      %232 = vst [vmem:[#allocation2 + $0x10] sm:$0xff] %v230
      %v233 = vld [vmem:[#allocation2] sm:$0xff]
      %v234 = vld [vmem:[#allocation2 + $0x8] sm:$0xff]
      %v235 = vld [vmem:[#allocation2 + $0x10] sm:$0xff]
      %v236 = vld [vmem:[#allocation2 + $0x18] sm:$0xff]
      %v237 = vrot.slane %v233, 7
      %v238 = vrot.slane %v234, 7
      %v239 = vrot.slane %v235, 7
      %v240 = vlaneseq
      %v241 = vshrl.u32 %v240, 7
      %vm242 = vcmp.lt.s32.totalorder %v241, 1
      %v243 = vsel %vm242, %v238, %v239
      %v244 = vsel %vm242, %v237, %v238
      %v245 = vrot.slane %v234, 1
      %v246 = vrot.slane %v235, 1
      %v247 = vrot.slane %v236, 1
      %vm248 = vcmp.lt.s32.totalorder %v241, 7
      %v249 = vsel %vm248, %v246, %v247
      %v250 = vsel %vm248, %v245, %v246
      %v251 = vld [vmem:[%s1] sm:$0xff]
      %v252 = vld [vmem:[%s1 + $0x8] sm:$0xff]
      %v253 = vld [vmem:[%s1 + $0x10] sm:$0xff]
      %v254 = vld [vmem:[%s1 + $0x18] sm:$0xff]
      %v255 = vld [vmem:[%s1 + $0x20] sm:$0xff]
      %v256 = vld [vmem:[%s1 + $0x28] sm:$0xff]
      %v257 = vld [vmem:[%s1 + $0x30] sm:$0xff]
      %v258 = vld [vmem:[%s1 + $0x38] sm:$0xff]
      %v259 = vld [vmem:[%s1 + $0x40] sm:$0xff]
      %v260 = vld [vmem:[%s1 + $0x48] sm:$0xff]
      %v261 = vld [vmem:[%s1 + $0x50] sm:$0xff]
      %v262 = vld [vmem:[%s1 + $0x58] sm:$0xff]
      %v263 = vld [vmem:[%s1 + $0x60] sm:$0xff]
      %v264 = vld [vmem:[%s1 + $0x68] sm:$0xff]
      %v265 = vld [vmem:[%s1 + $0x70] sm:$0xff]
      %v266 = vld [vmem:[%s1 + $0x78] sm:$0xff]
      %s267 = scalar_lea.vmem %s1, 128
      %v268 = vld [vmem:[%s267] sm:$0xff]
      %v269 = vld [vmem:[%s267 + $0x8] sm:$0xff]
      %v270 = vld [vmem:[%s267 + $0x10] sm:$0xff]
      %v271 = vld [vmem:[%s267 + $0x18] sm:$0xff]
      %v272 = vld [vmem:[%s267 + $0x20] sm:$0xff]
      %v273 = vld [vmem:[%s267 + $0x28] sm:$0xff]
      %v274 = vld [vmem:[%s267 + $0x30] sm:$0xff]
      %v275 = vld [vmem:[%s267 + $0x38] sm:$0xff]
      %v276 = vld [vmem:[%s267 + $0x40] sm:$0xff]
      %v277 = vld [vmem:[%s267 + $0x48] sm:$0xff]
      %v278 = vld [vmem:[%s267 + $0x50] sm:$0xff]
      %v279 = vld [vmem:[%s267 + $0x58] sm:$0xff]
      %v280 = vld [vmem:[%s267 + $0x60] sm:$0xff]
      %v281 = vld [vmem:[%s267 + $0x68] sm:$0xff]
      %v282 = vld [vmem:[%s267 + $0x70] sm:$0xff]
      %v283 = vld [vmem:[%s267 + $0x78] sm:$0xff]
      %284 = vmatprep.subr.mxu0 0.0
      %285 = vmatpush1.msra.mxu0 %v268
      %286 = vmatprep.subr.mxu0 0.0
      %287 = vmatpush1.msra.mxu0 %v269
      %288 = vmatprep.subr.mxu0 0.0
      %289 = vmatpush1.msra.mxu0 %v270
      %290 = vmatprep.subr.mxu0 0.0
      %291 = vmatpush1.msra.mxu0 %v271
      %292 = vmatprep.subr.mxu0 0.0
      %293 = vmatpush1.msra.mxu0 %v272
      %294 = vmatprep.subr.mxu0 0.0
      %295 = vmatpush1.msra.mxu0 %v273
      %296 = vmatprep.subr.mxu0 0.0
      %297 = vmatpush1.msra.mxu0 %v274
      %298 = vmatprep.subr.mxu0 0.0
      %299 = vmatpush1.msra.mxu0 %v275
      %300 = vmatprep.subr.mxu0 0.0
      %301 = vmatpush1.msra.mxu0 %v276
      %302 = vmatprep.subr.mxu0 0.0
      %303 = vmatpush1.msra.mxu0 %v277
      %304 = vmatprep.subr.mxu0 0.0
      %305 = vmatpush1.msra.mxu0 %v278
      %306 = vmatprep.subr.mxu0 0.0
      %307 = vmatpush1.msra.mxu0 %v279
      %308 = vmatprep.subr.mxu0 0.0
      %309 = vmatpush1.msra.mxu0 %v280
      %310 = vmatprep.subr.mxu0 0.0
      %311 = vmatpush1.msra.mxu0 %v281
      %312 = vmatprep.subr.mxu0 0.0
      %313 = vmatpush1.msra.mxu0 %v282
      %314 = vmatprep.subr.mxu0 0.0
      %315 = vmatpush1.msra.mxu0 %v283
      %316 = vmatprep.subr.mxu0 0.0
      %317 = vmatpush1.msra.mxu0 0.0
      %318 = vmatprep.subr.mxu0 0.0
      %319 = vmatpush1.msra.mxu0 0.0
      %320 = vmatprep.subr.mxu0 0.0
      %321 = vmatpush1.msra.mxu0 0.0
      %322 = vmatprep.subr.mxu0 0.0
      %323 = vmatpush1.msra.mxu0 0.0
      %324 = vmatprep.subr.mxu0 0.0
      %325 = vmatpush1.msra.mxu0 0.0
      %326 = vmatprep.subr.mxu0 0.0
      %327 = vmatpush1.msra.mxu0 0.0
      %328 = vmatprep.subr.mxu0 0.0
      %329 = vmatpush1.msra.mxu0 0.0
      %330 = vmatprep.subr.mxu0 0.0
      %331 = vmatpush1.msra.mxu0 0.0
      %332 = vmatprep.subr.mxu0 0.0
      %333 = vmatpush1.msra.mxu0 0.0
      %334 = vmatprep.subr.mxu0 0.0
      %335 = vmatpush1.msra.mxu0 0.0
      %336 = vmatprep.subr.mxu0 0.0
      %337 = vmatpush1.msra.mxu0 0.0
      %338 = vmatprep.subr.mxu0 0.0
      %339 = vmatpush1.msra.mxu0 0.0
      %340 = vmatprep.subr.mxu0 0.0
      %341 = vmatpush1.msra.mxu0 0.0
      %342 = vmatprep.subr.mxu0 0.0
      %343 = vmatpush1.msra.mxu0 0.0
      %344 = vmatprep.subr.mxu0 0.0
      %345 = vmatpush1.msra.mxu0 0.0
      %346 = vmatprep.subr.mxu0 0.0
      %347 = vmatpush1.msra.mxu0 0.0
      %348 = vmatprep.mubr.f32.mxu0 0.0
      %349 = vmatmul.mubr.f32.gmra.mrb[0].mxu0 %v234
      %v350 = vpop.f32.mrb[0].mxu0
      %v351 = vadd.f32 0.0, %v350
      %v352 = vpop.f32.mrb[0].mxu0
      %353 = vmatprep.mubr.f32.mxu0 0.0
      %354 = vmatmul.mubr.f32.gmra.mrb[0].mxu0 %v235
      %v355 = vpop.f32.mrb[0].mxu0
      %v356 = vadd.f32 0.0, %v355
      %v357 = vpop.f32.mrb[0].mxu0
      %358 = vdwg.mxu0
      %359 = vmatprep.subr.mxu0 0.0
      %360 = vmatpush1.msra.mxu0 %v251
      %361 = vmatprep.subr.mxu0 0.0
      %362 = vmatpush1.msra.mxu0 %v252
      %363 = vmatprep.subr.mxu0 0.0
      %364 = vmatpush1.msra.mxu0 %v253
      %365 = vmatprep.subr.mxu0 0.0
      %366 = vmatpush1.msra.mxu0 %v254
      %367 = vmatprep.subr.mxu0 0.0
      %368 = vmatpush1.msra.mxu0 %v255
      %369 = vmatprep.subr.mxu0 0.0
      %370 = vmatpush1.msra.mxu0 %v256
      %371 = vmatprep.subr.mxu0 0.0
      %372 = vmatpush1.msra.mxu0 %v257
      %373 = vmatprep.subr.mxu0 0.0
      %374 = vmatpush1.msra.mxu0 %v258
      %375 = vmatprep.subr.mxu0 0.0
      %376 = vmatpush1.msra.mxu0 %v259
      %377 = vmatprep.subr.mxu0 0.0
      %378 = vmatpush1.msra.mxu0 %v260
      %379 = vmatprep.subr.mxu0 0.0
      %380 = vmatpush1.msra.mxu0 %v261
      %381 = vmatprep.subr.mxu0 0.0
      %382 = vmatpush1.msra.mxu0 %v262
      %383 = vmatprep.subr.mxu0 0.0
      %384 = vmatpush1.msra.mxu0 %v263
      %385 = vmatprep.subr.mxu0 0.0
      %386 = vmatpush1.msra.mxu0 %v264
      %387 = vmatprep.subr.mxu0 0.0
      %388 = vmatpush1.msra.mxu0 %v265
      %389 = vmatprep.subr.mxu0 0.0
      %390 = vmatpush1.msra.mxu0 %v266
      %391 = vmatprep.subr.mxu0 0.0
      %392 = vmatpush1.msra.mxu0 0.0
      %393 = vmatprep.subr.mxu0 0.0
      %394 = vmatpush1.msra.mxu0 0.0
      %395 = vmatprep.subr.mxu0 0.0
      %396 = vmatpush1.msra.mxu0 0.0
      %397 = vmatprep.subr.mxu0 0.0
      %398 = vmatpush1.msra.mxu0 0.0
      %399 = vmatprep.subr.mxu0 0.0
      %400 = vmatpush1.msra.mxu0 0.0
      %401 = vmatprep.subr.mxu0 0.0
      %402 = vmatpush1.msra.mxu0 0.0
      %403 = vmatprep.subr.mxu0 0.0
      %404 = vmatpush1.msra.mxu0 0.0
      %405 = vmatprep.subr.mxu0 0.0
      %406 = vmatpush1.msra.mxu0 0.0
      %407 = vmatprep.subr.mxu0 0.0
      %408 = vmatpush1.msra.mxu0 0.0
      %409 = vmatprep.subr.mxu0 0.0
      %410 = vmatpush1.msra.mxu0 0.0
      %411 = vmatprep.subr.mxu0 0.0
      %412 = vmatpush1.msra.mxu0 0.0
      %413 = vmatprep.subr.mxu0 0.0
      %414 = vmatpush1.msra.mxu0 0.0
      %415 = vmatprep.subr.mxu0 0.0
      %416 = vmatpush1.msra.mxu0 0.0
      %417 = vmatprep.subr.mxu0 0.0
      %418 = vmatpush1.msra.mxu0 0.0
      %419 = vmatprep.subr.mxu0 0.0
      %420 = vmatpush1.msra.mxu0 0.0
      %421 = vmatprep.subr.mxu0 0.0
      %422 = vmatpush1.msra.mxu0 0.0
      %423 = vmatprep.mubr.f32.mxu0 0.0
      %424 = vmatmul.mubr.f32.gmra.mrb[0].mxu0 %v244
      %v425 = vpop.f32.mrb[0].mxu0
      %v426 = vadd.f32 %v351, %v425
      %v427 = vpop.f32.mrb[0].mxu0
      %428 = vmatprep.mubr.f32.mxu0 0.0
      %429 = vmatmul.mubr.f32.gmra.mrb[0].mxu0 %v243
      %v430 = vpop.f32.mrb[0].mxu0
      %v431 = vadd.f32 %v356, %v430
      %v432 = vpop.f32.mrb[0].mxu0
      %433 = vdwg.mxu0
      %s434 = scalar_lea.vmem %s1, 256
      %v435 = vld [vmem:[%s434] sm:$0xff]
      %v436 = vld [vmem:[%s434 + $0x8] sm:$0xff]
      %v437 = vld [vmem:[%s434 + $0x10] sm:$0xff]
      %v438 = vld [vmem:[%s434 + $0x18] sm:$0xff]
      %v439 = vld [vmem:[%s434 + $0x20] sm:$0xff]
      %v440 = vld [vmem:[%s434 + $0x28] sm:$0xff]
      %v441 = vld [vmem:[%s434 + $0x30] sm:$0xff]
      %v442 = vld [vmem:[%s434 + $0x38] sm:$0xff]
      %v443 = vld [vmem:[%s434 + $0x40] sm:$0xff]
      %v444 = vld [vmem:[%s434 + $0x48] sm:$0xff]
      %v445 = vld [vmem:[%s434 + $0x50] sm:$0xff]
      %v446 = vld [vmem:[%s434 + $0x58] sm:$0xff]
      %v447 = vld [vmem:[%s434 + $0x60] sm:$0xff]
      %v448 = vld [vmem:[%s434 + $0x68] sm:$0xff]
      %v449 = vld [vmem:[%s434 + $0x70] sm:$0xff]
      %v450 = vld [vmem:[%s434 + $0x78] sm:$0xff]
      %451 = vmatprep.subr.mxu0 0.0
      %452 = vmatpush1.msra.mxu0 %v435
      %453 = vmatprep.subr.mxu0 0.0
      %454 = vmatpush1.msra.mxu0 %v436
      %455 = vmatprep.subr.mxu0 0.0
      %456 = vmatpush1.msra.mxu0 %v437
      %457 = vmatprep.subr.mxu0 0.0
      %458 = vmatpush1.msra.mxu0 %v438
      %459 = vmatprep.subr.mxu0 0.0
      %460 = vmatpush1.msra.mxu0 %v439
      %461 = vmatprep.subr.mxu0 0.0
      %462 = vmatpush1.msra.mxu0 %v440
      %463 = vmatprep.subr.mxu0 0.0
      %464 = vmatpush1.msra.mxu0 %v441
      %465 = vmatprep.subr.mxu0 0.0
      %466 = vmatpush1.msra.mxu0 %v442
      %467 = vmatprep.subr.mxu0 0.0
      %468 = vmatpush1.msra.mxu0 %v443
      %469 = vmatprep.subr.mxu0 0.0
      %470 = vmatpush1.msra.mxu0 %v444
      %471 = vmatprep.subr.mxu0 0.0
      %472 = vmatpush1.msra.mxu0 %v445
      %473 = vmatprep.subr.mxu0 0.0
      %474 = vmatpush1.msra.mxu0 %v446
      %475 = vmatprep.subr.mxu0 0.0
      %476 = vmatpush1.msra.mxu0 %v447
      %477 = vmatprep.subr.mxu0 0.0
      %478 = vmatpush1.msra.mxu0 %v448
      %479 = vmatprep.subr.mxu0 0.0
      %480 = vmatpush1.msra.mxu0 %v449
      %481 = vmatprep.subr.mxu0 0.0
      %482 = vmatpush1.msra.mxu0 %v450
      %483 = vmatprep.subr.mxu0 0.0
      %484 = vmatpush1.msra.mxu0 0.0
      %485 = vmatprep.subr.mxu0 0.0
      %486 = vmatpush1.msra.mxu0 0.0
      %487 = vmatprep.subr.mxu0 0.0
      %488 = vmatpush1.msra.mxu0 0.0
      %489 = vmatprep.subr.mxu0 0.0
      %490 = vmatpush1.msra.mxu0 0.0
      %491 = vmatprep.subr.mxu0 0.0
      %492 = vmatpush1.msra.mxu0 0.0
      %493 = vmatprep.subr.mxu0 0.0
      %494 = vmatpush1.msra.mxu0 0.0
      %495 = vmatprep.subr.mxu0 0.0
      %496 = vmatpush1.msra.mxu0 0.0
      %497 = vmatprep.subr.mxu0 0.0
      %498 = vmatpush1.msra.mxu0 0.0
      %499 = vmatprep.subr.mxu0 0.0
      %500 = vmatpush1.msra.mxu0 0.0
      %501 = vmatprep.subr.mxu0 0.0
      %502 = vmatpush1.msra.mxu0 0.0
      %503 = vmatprep.subr.mxu0 0.0
      %504 = vmatpush1.msra.mxu0 0.0
      %505 = vmatprep.subr.mxu0 0.0
      %506 = vmatpush1.msra.mxu0 0.0
      %507 = vmatprep.subr.mxu0 0.0
      %508 = vmatpush1.msra.mxu0 0.0
      %509 = vmatprep.subr.mxu0 0.0
      %510 = vmatpush1.msra.mxu0 0.0
      %511 = vmatprep.subr.mxu0 0.0
      %512 = vmatpush1.msra.mxu0 0.0
      %513 = vmatprep.subr.mxu0 0.0
      %514 = vmatpush1.msra.mxu0 0.0
      %515 = vmatprep.mubr.f32.mxu0 0.0
      %516 = vmatmul.mubr.f32.gmra.mrb[0].mxu0 %v250
      %v517 = vpop.f32.mrb[0].mxu0
      %v518 = vadd.f32 0.0, %v517
      %v519 = vpop.f32.mrb[0].mxu0
      %520 = vmatprep.mubr.f32.mxu0 0.0
      %521 = vmatmul.mubr.f32.gmra.mrb[0].mxu0 %v249
      %v522 = vpop.f32.mrb[0].mxu0
      %v523 = vadd.f32 0.0, %v522
      %v524 = vpop.f32.mrb[0].mxu0
      %525 = vdwg.mxu0
      %v526 = vadd.f32 %v426, %v518
      %v527 = vadd.f32 %v431, %v523
      %v528 = vld [vmem:[%s3] sm:$0x1]
      %v529 = vlaneseq
      %v530 = vshrl.u32 %v529, 7
      %v531 = vsub.s32 0, %v530
      %v532 = vrot.slane %v528, %v531
      %v533 = vadd.f32 %v526, %v532
      %v534 = vadd.f32 %v527, %v532
      %v535 = vmax.f32 %v533, 0.0
      %v536 = vmax.f32 %v534, 0.0
      %v537 = vld [vmem:[%s3 + $0x1] sm:$0x1]
      %v538 = vlaneseq
      %v539 = vshrl.u32 %v538, 7
      %v540 = vsub.s32 0, %v539
      %v541 = vrot.slane %v537, %v540
      %v542 = vmul.f32 %v535, %v541
      %v543 = vmul.f32 %v536, %v541
      %v544 = vld [vmem:[%s3 + $0x2] sm:$0x1]
      %v545 = vlaneseq
      %v546 = vshrl.u32 %v545, 7
      %v547 = vsub.s32 0, %v546
      %v548 = vrot.slane %v544, %v547
      %v549 = vadd.f32 %v542, %v548
      %v550 = vadd.f32 %v543, %v548
      %551 = vst [vmem:[#allocation3 + $0x8] sm:$0xff] %v549
      %552 = vst [vmem:[#allocation3 + $0x10] sm:$0xff] %v550
      %v553 = vld [vmem:[#allocation3] sm:$0xff]
      %v554 = vld [vmem:[#allocation3 + $0x8] sm:$0xff]
      %v555 = vld [vmem:[#allocation3 + $0x10] sm:$0xff]
      %v556 = vld [vmem:[#allocation3 + $0x18] sm:$0xff]
      %v557 = vrot.slane %v553, 7
      %v558 = vrot.slane %v554, 7
      %v559 = vrot.slane %v555, 7
      %v560 = vsel %vm242, %v558, %v559
      %v561 = vsel %vm242, %v557, %v558
      %v562 = vrot.slane %v554, 1
      %v563 = vrot.slane %v555, 1
      %v564 = vrot.slane %v556, 1
      %v565 = vsel %vm248, %v563, %v564
      %v566 = vsel %vm248, %v562, %v563
      %v567 = vld [vmem:[%s2] sm:$0xff]
      %v568 = vld [vmem:[%s2 + $0x8] sm:$0xff]
      %v569 = vld [vmem:[%s2 + $0x10] sm:$0xff]
      %v570 = vld [vmem:[%s2 + $0x18] sm:$0xff]
      %v571 = vld [vmem:[%s2 + $0x20] sm:$0xff]
      %v572 = vld [vmem:[%s2 + $0x28] sm:$0xff]
      %v573 = vld [vmem:[%s2 + $0x30] sm:$0xff]
      %v574 = vld [vmem:[%s2 + $0x38] sm:$0xff]
      %v575 = vld [vmem:[%s2 + $0x40] sm:$0xff]
      %v576 = vld [vmem:[%s2 + $0x48] sm:$0xff]
      %v577 = vld [vmem:[%s2 + $0x50] sm:$0xff]
      %v578 = vld [vmem:[%s2 + $0x58] sm:$0xff]
      %v579 = vld [vmem:[%s2 + $0x60] sm:$0xff]
      %v580 = vld [vmem:[%s2 + $0x68] sm:$0xff]
      %v581 = vld [vmem:[%s2 + $0x70] sm:$0xff]
      %v582 = vld [vmem:[%s2 + $0x78] sm:$0xff]
      %s583 = scalar_lea.vmem %s2, 128
      %v584 = vld [vmem:[%s583] sm:$0xff]
      %v585 = vld [vmem:[%s583 + $0x8] sm:$0xff]
      %v586 = vld [vmem:[%s583 + $0x10] sm:$0xff]
      %v587 = vld [vmem:[%s583 + $0x18] sm:$0xff]
      %v588 = vld [vmem:[%s583 + $0x20] sm:$0xff]
      %v589 = vld [vmem:[%s583 + $0x28] sm:$0xff]
      %v590 = vld [vmem:[%s583 + $0x30] sm:$0xff]
      %v591 = vld [vmem:[%s583 + $0x38] sm:$0xff]
      %v592 = vld [vmem:[%s583 + $0x40] sm:$0xff]
      %v593 = vld [vmem:[%s583 + $0x48] sm:$0xff]
      %v594 = vld [vmem:[%s583 + $0x50] sm:$0xff]
      %v595 = vld [vmem:[%s583 + $0x58] sm:$0xff]
      %v596 = vld [vmem:[%s583 + $0x60] sm:$0xff]
      %v597 = vld [vmem:[%s583 + $0x68] sm:$0xff]
      %v598 = vld [vmem:[%s583 + $0x70] sm:$0xff]
      %v599 = vld [vmem:[%s583 + $0x78] sm:$0xff]
      %600 = vmatprep.subr.mxu0 0.0
      %601 = vmatpush1.msra.mxu0 %v584
      %602 = vmatprep.subr.mxu0 0.0
      %603 = vmatpush1.msra.mxu0 %v585
      %604 = vmatprep.subr.mxu0 0.0
      %605 = vmatpush1.msra.mxu0 %v586
      %606 = vmatprep.subr.mxu0 0.0
      %607 = vmatpush1.msra.mxu0 %v587
      %608 = vmatprep.subr.mxu0 0.0
      %609 = vmatpush1.msra.mxu0 %v588
      %610 = vmatprep.subr.mxu0 0.0
      %611 = vmatpush1.msra.mxu0 %v589
      %612 = vmatprep.subr.mxu0 0.0
      %613 = vmatpush1.msra.mxu0 %v590
      %614 = vmatprep.subr.mxu0 0.0
      %615 = vmatpush1.msra.mxu0 %v591
      %616 = vmatprep.subr.mxu0 0.0
      %617 = vmatpush1.msra.mxu0 %v592
      %618 = vmatprep.subr.mxu0 0.0
      %619 = vmatpush1.msra.mxu0 %v593
      %620 = vmatprep.subr.mxu0 0.0
      %621 = vmatpush1.msra.mxu0 %v594
      %622 = vmatprep.subr.mxu0 0.0
      %623 = vmatpush1.msra.mxu0 %v595
      %624 = vmatprep.subr.mxu0 0.0
      %625 = vmatpush1.msra.mxu0 %v596
      %626 = vmatprep.subr.mxu0 0.0
      %627 = vmatpush1.msra.mxu0 %v597
      %628 = vmatprep.subr.mxu0 0.0
      %629 = vmatpush1.msra.mxu0 %v598
      %630 = vmatprep.subr.mxu0 0.0
      %631 = vmatpush1.msra.mxu0 %v599
      %632 = vmatprep.subr.mxu0 0.0
      %633 = vmatpush1.msra.mxu0 0.0
      %634 = vmatprep.subr.mxu0 0.0
      %635 = vmatpush1.msra.mxu0 0.0
      %636 = vmatprep.subr.mxu0 0.0
      %637 = vmatpush1.msra.mxu0 0.0
      %638 = vmatprep.subr.mxu0 0.0
      %639 = vmatpush1.msra.mxu0 0.0
      %640 = vmatprep.subr.mxu0 0.0
      %641 = vmatpush1.msra.mxu0 0.0
      %642 = vmatprep.subr.mxu0 0.0
      %643 = vmatpush1.msra.mxu0 0.0
      %644 = vmatprep.subr.mxu0 0.0
      %645 = vmatpush1.msra.mxu0 0.0
      %646 = vmatprep.subr.mxu0 0.0
      %647 = vmatpush1.msra.mxu0 0.0
      %648 = vmatprep.subr.mxu0 0.0
      %649 = vmatpush1.msra.mxu0 0.0
      %650 = vmatprep.subr.mxu0 0.0
      %651 = vmatpush1.msra.mxu0 0.0
      %652 = vmatprep.subr.mxu0 0.0
      %653 = vmatpush1.msra.mxu0 0.0
      %654 = vmatprep.subr.mxu0 0.0
      %655 = vmatpush1.msra.mxu0 0.0
      %656 = vmatprep.subr.mxu0 0.0
      %657 = vmatpush1.msra.mxu0 0.0
      %658 = vmatprep.subr.mxu0 0.0
      %659 = vmatpush1.msra.mxu0 0.0
      %660 = vmatprep.subr.mxu0 0.0
      %661 = vmatpush1.msra.mxu0 0.0
      %662 = vmatprep.subr.mxu0 0.0
      %663 = vmatpush1.msra.mxu0 0.0
      %664 = vmatprep.mubr.f32.mxu0 0.0
      %665 = vmatmul.mubr.f32.gmra.mrb[0].mxu0 %v554
      %v666 = vpop.f32.mrb[0].mxu0
      %v667 = vadd.f32 0.0, %v666
      %v668 = vpop.f32.mrb[0].mxu0
      %669 = vmatprep.mubr.f32.mxu0 0.0
      %670 = vmatmul.mubr.f32.gmra.mrb[0].mxu0 %v555
      %v671 = vpop.f32.mrb[0].mxu0
      %v672 = vadd.f32 0.0, %v671
      %v673 = vpop.f32.mrb[0].mxu0
      %674 = vdwg.mxu0
      %675 = vmatprep.subr.mxu0 0.0
      %676 = vmatpush1.msra.mxu0 %v567
      %677 = vmatprep.subr.mxu0 0.0
      %678 = vmatpush1.msra.mxu0 %v568
      %679 = vmatprep.subr.mxu0 0.0
      %680 = vmatpush1.msra.mxu0 %v569
      %681 = vmatprep.subr.mxu0 0.0
      %682 = vmatpush1.msra.mxu0 %v570
      %683 = vmatprep.subr.mxu0 0.0
      %684 = vmatpush1.msra.mxu0 %v571
      %685 = vmatprep.subr.mxu0 0.0
      %686 = vmatpush1.msra.mxu0 %v572
      %687 = vmatprep.subr.mxu0 0.0
      %688 = vmatpush1.msra.mxu0 %v573
      %689 = vmatprep.subr.mxu0 0.0
      %690 = vmatpush1.msra.mxu0 %v574
      %691 = vmatprep.subr.mxu0 0.0
      %692 = vmatpush1.msra.mxu0 %v575
      %693 = vmatprep.subr.mxu0 0.0
      %694 = vmatpush1.msra.mxu0 %v576
      %695 = vmatprep.subr.mxu0 0.0
      %696 = vmatpush1.msra.mxu0 %v577
      %697 = vmatprep.subr.mxu0 0.0
      %698 = vmatpush1.msra.mxu0 %v578
      %699 = vmatprep.subr.mxu0 0.0
      %700 = vmatpush1.msra.mxu0 %v579
      %701 = vmatprep.subr.mxu0 0.0
      %702 = vmatpush1.msra.mxu0 %v580
      %703 = vmatprep.subr.mxu0 0.0
      %704 = vmatpush1.msra.mxu0 %v581
      %705 = vmatprep.subr.mxu0 0.0
      %706 = vmatpush1.msra.mxu0 %v582
      %707 = vmatprep.subr.mxu0 0.0
      %708 = vmatpush1.msra.mxu0 0.0
      %709 = vmatprep.subr.mxu0 0.0
      %710 = vmatpush1.msra.mxu0 0.0
      %711 = vmatprep.subr.mxu0 0.0
      %712 = vmatpush1.msra.mxu0 0.0
      %713 = vmatprep.subr.mxu0 0.0
      %714 = vmatpush1.msra.mxu0 0.0
      %715 = vmatprep.subr.mxu0 0.0
      %716 = vmatpush1.msra.mxu0 0.0
      %717 = vmatprep.subr.mxu0 0.0
      %718 = vmatpush1.msra.mxu0 0.0
      %719 = vmatprep.subr.mxu0 0.0
      %720 = vmatpush1.msra.mxu0 0.0
      %721 = vmatprep.subr.mxu0 0.0
      %722 = vmatpush1.msra.mxu0 0.0
      %723 = vmatprep.subr.mxu0 0.0
      %724 = vmatpush1.msra.mxu0 0.0
      %725 = vmatprep.subr.mxu0 0.0
      %726 = vmatpush1.msra.mxu0 0.0
      %727 = vmatprep.subr.mxu0 0.0
      %728 = vmatpush1.msra.mxu0 0.0
      %729 = vmatprep.subr.mxu0 0.0
      %730 = vmatpush1.msra.mxu0 0.0
      %731 = vmatprep.subr.mxu0 0.0
      %732 = vmatpush1.msra.mxu0 0.0
      %733 = vmatprep.subr.mxu0 0.0
      %734 = vmatpush1.msra.mxu0 0.0
      %735 = vmatprep.subr.mxu0 0.0
      %736 = vmatpush1.msra.mxu0 0.0
      %737 = vmatprep.subr.mxu0 0.0
      %738 = vmatpush1.msra.mxu0 0.0
      %739 = vmatprep.mubr.f32.mxu0 0.0
      %740 = vmatmul.mubr.f32.gmra.mrb[0].mxu0 %v561
      %v741 = vpop.f32.mrb[0].mxu0
      %v742 = vadd.f32 %v667, %v741
      %v743 = vpop.f32.mrb[0].mxu0
      %744 = vmatprep.mubr.f32.mxu0 0.0
      %745 = vmatmul.mubr.f32.gmra.mrb[0].mxu0 %v560
      %v746 = vpop.f32.mrb[0].mxu0
      %v747 = vadd.f32 %v672, %v746
      %v748 = vpop.f32.mrb[0].mxu0
      %749 = vdwg.mxu0
      %s750 = scalar_lea.vmem %s2, 256
      %v751 = vld [vmem:[%s750] sm:$0xff]
      %v752 = vld [vmem:[%s750 + $0x8] sm:$0xff]
      %v753 = vld [vmem:[%s750 + $0x10] sm:$0xff]
      %v754 = vld [vmem:[%s750 + $0x18] sm:$0xff]
      %v755 = vld [vmem:[%s750 + $0x20] sm:$0xff]
      %v756 = vld [vmem:[%s750 + $0x28] sm:$0xff]
      %v757 = vld [vmem:[%s750 + $0x30] sm:$0xff]
      %v758 = vld [vmem:[%s750 + $0x38] sm:$0xff]
      %v759 = vld [vmem:[%s750 + $0x40] sm:$0xff]
      %v760 = vld [vmem:[%s750 + $0x48] sm:$0xff]
      %v761 = vld [vmem:[%s750 + $0x50] sm:$0xff]
      %v762 = vld [vmem:[%s750 + $0x58] sm:$0xff]
      %v763 = vld [vmem:[%s750 + $0x60] sm:$0xff]
      %v764 = vld [vmem:[%s750 + $0x68] sm:$0xff]
      %v765 = vld [vmem:[%s750 + $0x70] sm:$0xff]
      %v766 = vld [vmem:[%s750 + $0x78] sm:$0xff]
      %767 = vmatprep.subr.mxu0 0.0
      %768 = vmatpush1.msra.mxu0 %v751
      %769 = vmatprep.subr.mxu0 0.0
      %770 = vmatpush1.msra.mxu0 %v752
      %771 = vmatprep.subr.mxu0 0.0
      %772 = vmatpush1.msra.mxu0 %v753
      %773 = vmatprep.subr.mxu0 0.0
      %774 = vmatpush1.msra.mxu0 %v754
      %775 = vmatprep.subr.mxu0 0.0
      %776 = vmatpush1.msra.mxu0 %v755
      %777 = vmatprep.subr.mxu0 0.0
      %778 = vmatpush1.msra.mxu0 %v756
      %779 = vmatprep.subr.mxu0 0.0
      %780 = vmatpush1.msra.mxu0 %v757
      %781 = vmatprep.subr.mxu0 0.0
      %782 = vmatpush1.msra.mxu0 %v758
      %783 = vmatprep.subr.mxu0 0.0
      %784 = vmatpush1.msra.mxu0 %v759
      %785 = vmatprep.subr.mxu0 0.0
      %786 = vmatpush1.msra.mxu0 %v760
      %787 = vmatprep.subr.mxu0 0.0
      %788 = vmatpush1.msra.mxu0 %v761
      %789 = vmatprep.subr.mxu0 0.0
      %790 = vmatpush1.msra.mxu0 %v762
      %791 = vmatprep.subr.mxu0 0.0
      %792 = vmatpush1.msra.mxu0 %v763
      %793 = vmatprep.subr.mxu0 0.0
      %794 = vmatpush1.msra.mxu0 %v764
      %795 = vmatprep.subr.mxu0 0.0
      %796 = vmatpush1.msra.mxu0 %v765
      %797 = vmatprep.subr.mxu0 0.0
      %798 = vmatpush1.msra.mxu0 %v766
      %799 = vmatprep.subr.mxu0 0.0
      %800 = vmatpush1.msra.mxu0 0.0
      %801 = vmatprep.subr.mxu0 0.0
      %802 = vmatpush1.msra.mxu0 0.0
      %803 = vmatprep.subr.mxu0 0.0
      %804 = vmatpush1.msra.mxu0 0.0
      %805 = vmatprep.subr.mxu0 0.0
      %806 = vmatpush1.msra.mxu0 0.0
      %807 = vmatprep.subr.mxu0 0.0
      %808 = vmatpush1.msra.mxu0 0.0
      %809 = vmatprep.subr.mxu0 0.0
      %810 = vmatpush1.msra.mxu0 0.0
      %811 = vmatprep.subr.mxu0 0.0
      %812 = vmatpush1.msra.mxu0 0.0
      %813 = vmatprep.subr.mxu0 0.0
      %814 = vmatpush1.msra.mxu0 0.0
      %815 = vmatprep.subr.mxu0 0.0
      %816 = vmatpush1.msra.mxu0 0.0
      %817 = vmatprep.subr.mxu0 0.0
      %818 = vmatpush1.msra.mxu0 0.0
      %819 = vmatprep.subr.mxu0 0.0
      %820 = vmatpush1.msra.mxu0 0.0
      %821 = vmatprep.subr.mxu0 0.0
      %822 = vmatpush1.msra.mxu0 0.0
      %823 = vmatprep.subr.mxu0 0.0
      %824 = vmatpush1.msra.mxu0 0.0
      %825 = vmatprep.subr.mxu0 0.0
      %826 = vmatpush1.msra.mxu0 0.0
      %827 = vmatprep.subr.mxu0 0.0
      %828 = vmatpush1.msra.mxu0 0.0
      %829 = vmatprep.subr.mxu0 0.0
      %830 = vmatpush1.msra.mxu0 0.0
      %831 = vmatprep.mubr.f32.mxu0 0.0
      %832 = vmatmul.mubr.f32.gmra.mrb[0].mxu0 %v566
      %v833 = vpop.f32.mrb[0].mxu0
      %v834 = vadd.f32 0.0, %v833
      %v835 = vpop.f32.mrb[0].mxu0
      %836 = vmatprep.mubr.f32.mxu0 0.0
      %837 = vmatmul.mubr.f32.gmra.mrb[0].mxu0 %v565
      %v838 = vpop.f32.mrb[0].mxu0
      %v839 = vadd.f32 0.0, %v838
      %v840 = vpop.f32.mrb[0].mxu0
      %841 = vdwg.mxu0
      %v842 = vadd.f32 %v742, %v834
      %v843 = vadd.f32 %v747, %v839
      %v844 = vld [vmem:[%s4] sm:$0x1]
      %v845 = vlaneseq
      %v846 = vshrl.u32 %v845, 7
      %v847 = vsub.s32 0, %v846
      %v848 = vrot.slane %v844, %v847
      %v849 = vadd.f32 %v842, %v848
      %v850 = vadd.f32 %v843, %v848
      %v851 = vmax.f32 %v849, 0.0
      %v852 = vmax.f32 %v850, 0.0
      %v853 = vld [vmem:[%s4 + $0x1] sm:$0x1]
      %v854 = vlaneseq
      %v855 = vshrl.u32 %v854, 7
      %v856 = vsub.s32 0, %v855
      %v857 = vrot.slane %v853, %v856
      %v858 = vmul.f32 %v851, %v857
      %v859 = vmul.f32 %v852, %v857
      %v860 = vld [vmem:[%s4 + $0x2] sm:$0x1]
      %v861 = vlaneseq
      %v862 = vshrl.u32 %v861, 7
      %v863 = vsub.s32 0, %v862
      %v864 = vrot.slane %v860, %v863
      %v865 = vadd.f32 %v858, %v864
      %v866 = vadd.f32 %v859, %v864
      %867 = vst [vmem:[%s224] sm:$0xff] %v865
      %868 = vst [vmem:[%s224 + $0x8] sm:$0xff] %v866
      %p869 = scmp.lt.s32.totalorder %s16, 1
      %s870 = scalar_select %p869, %s16, 1
      %s871 = smul.addr %s870, 2
      %s872 = smul.addr %s871, 8
      %s873 = scalar_lea.vmem %s5, %s872
      // Predicated region
      $region41: #{_lambda_.1} parent=39 // pred_check
        %p874 = pneg %p144
      $region42: #{_lambda_.1} parent=39 // pred_check_branch
        %876 = sbr.rel (%p874) target = $region44
      $region43: #{_lambda_.1} parent=39 // pred_region
        _
      $region44: #{_lambda_.1} parent=39 // pred_fallthru
        _
    $region40: #{_lambda_.1} parent=5 // pred_fallthru
      _
    %p877 = scmp.le.s32.totalorder 2, %s11
    // Predicated region
    $region45: #{_lambda_.1} parent=5 // pred_check
      %p878 = pneg %p877
    $region46: #{_lambda_.1} parent=5 // pred_check_branch
      %880 = sbr.rel (%p878) target = $region48
    $region47: #{_lambda_.1} parent=5 // pred_region
      %s881 = ssub.s32 %s11, 2
      // Predicated region
      $region49: #{_lambda_.1} parent=47 // pred_check
        %p882 = pneg %p150
      $region50: #{_lambda_.1} parent=47 // pred_check_branch
        %884 = sbr.rel (%p882) target = $region52
      $region51: #{_lambda_.1} parent=47 // pred_region
        %p885 = scmp.lt.s32.totalorder %s17, 1
        %s886 = scalar_select %p885, %s17, 1
        %s887 = smul.addr %s886, 2
        %s888 = smul.addr %s887, 8
        %s889 = scalar_lea.vmem %s5, %s888
      $region52: #{_lambda_.1} parent=47 // pred_fallthru
        _
    $region48: #{_lambda_.1} parent=5 // pred_fallthru
      _
  $region6: #{_lambda_.1} parent=0 // loop_footer
    %s15 = sadd.s32 1, %s11
  $region7: #{_lambda_.1} parent=0 // loop_footer_branch
    %10 = sbr.rel target = $region3
  $region8: #{_lambda_.1} parent=0 // loop_exit
    _

</llo_original>
